<compile_context>
chip_gen: v6e
topology: v6e:2x2x1
jax: 0.10.0
libtpu: 0.0.40
codegen_flags: <defaults>
</compile_context>

<pallas_src>
import jax
import jax.numpy as jnp
from jax.experimental import pallas as pl
from jax.experimental.pallas import tpu as pltpu

LN_EPS = 1e-5  # torch.nn.LayerNorm default


# ----------------------------------------------------------------------------
# Kernels
# ----------------------------------------------------------------------------
def _attn_output_kernel_resident(x_ref, res_ref, w_ref, p_ref, o_ref):
    """Single K step (weight fully resident).  No accumulator scratch."""
    # x_ref: (TM, H_in)  w_ref: (H_in, H_out)  res_ref/o_ref: (TM, H_out)
    # p_ref: (3, H_out) f32 rows = [bias, gamma, beta]
    y = jnp.dot(x_ref[...], w_ref[...], preferred_element_type=jnp.float32)
    y = y + p_ref[0:1, :] + res_ref[...].astype(jnp.float32)
    # TODO(synk): dropout is identity in eval mode; training-mode dropout would
    # use pltpu.prng_seed + pltpu.stateful_bernoulli here.

    # Two-pass LayerNorm statistics (mean first, then centered sum of squares)
    # for numerical stability; reductions are over the lane dim (XLU).
    h = y.shape[-1]
    mean = jnp.sum(y, axis=-1, keepdims=True) * (1.0 / h)
    yc = y - mean
    var = jnp.sum(yc * yc, axis=-1, keepdims=True) * (1.0 / h)
    inv = jax.lax.rsqrt(var + LN_EPS)          # EUP slot, effectively free
    o_ref[...] = (yc * inv * p_ref[1:2, :] + p_ref[2:3, :]).astype(o_ref.dtype)


def _attn_output_kernel_ktiled(x_ref, res_ref, w_ref, p_ref, o_ref, acc_ref):
    """K-reduction grid axis with f32 accumulator (large-H fallback)."""
    k = pl.program_id(1)

    @pl.when(k == 0)
    def _init():
        acc_ref[...] = jnp.zeros_like(acc_ref)

    acc_ref[...] += jnp.dot(x_ref[...], w_ref[...],
                            preferred_element_type=jnp.float32)

    @pl.when(k == pl.num_programs(1) - 1)
    def _finalize():
        # Fold bias + residual into the accumulator in place (less vst/spill
        # pressure than carrying a separate full f32 temporary).
        acc_ref[...] += p_ref[0:1, :] + res_ref[...].astype(jnp.float32)
        y = acc_ref[...]
        # TODO(synk): training-mode dropout not implemented (eval = identity).
        h = y.shape[-1]
        mean = jnp.sum(y, axis=-1, keepdims=True) * (1.0 / h)
        yc = y - mean
        var = jnp.sum(yc * yc, axis=-1, keepdims=True) * (1.0 / h)
        inv = jax.lax.rsqrt(var + LN_EPS)
        o_ref[...] = (yc * inv * p_ref[1:2, :] + p_ref[2:3, :]).astype(o_ref.dtype)


# ----------------------------------------------------------------------------
# Tiling policy helpers
# ----------------------------------------------------------------------------
def _round_up(x, m):
    return (x + m - 1) // m * m


def _vmem_capacity_bytes():
    """Physical VMEM per TensorCore; conservative 64 MiB (v7x) fallback."""
    try:
        info = pltpu.get_tpu_info()
        cap = getattr(info, "vmem_capacity_bytes", None)
        if cap:
            return int(cap)
    except Exception:
        pass
    return 64 << 20


def _footprint(tile_m, tile_k, h_out, dsize, rsize, wsize, osize, psize,
               *, with_acc):
    """VMEM bytes for one grid step with double-buffered pipeline buffers."""
    fp = 2 * tile_m * tile_k * dsize      # x tiles
    fp += 2 * tile_m * h_out * rsize      # residual tiles
    fp += 2 * tile_k * h_out * wsize      # weight slice (resident when tile_k=h_in)
    fp += 2 * 3 * h_out * psize           # fused bias/gamma/beta
    fp += 2 * tile_m * h_out * osize      # output tiles
    if with_acc:
        fp += tile_m * h_out * 4          # f32 accumulator scratch
    return fp


def _pick_tile_m(m, tile_k, h_out, dsize, rsize, wsize, osize, psize,
                 k_tiled, vmem_budget):
    cands = (1024, 512, 256, 128, 64, 32, 16, 8)
    fits = [t for t in cands
            if t <= m and m % t == 0
            and _footprint(t, tile_k, h_out, dsize, rsize, wsize, osize, psize,
                           with_acc=k_tiled) <= vmem_budget]
    # Prefer >= 2 row tiles so the "parallel" M axis can feed both TCs on v7x.
    multi = [t for t in fits if m // t >= 2]
    if multi:
        return multi[0]
    if fits:
        return fits[0]
    return 8 if (m >= 8 and m % 8 == 0) else m


# ----------------------------------------------------------------------------
# Wrapper
# ----------------------------------------------------------------------------
def attention_output(hidden_states, input_tensor, w, b, gamma, beta,
                     *, tile_m=None, tile_k=None):
    """Fused dense -> dropout(eval: identity) -> residual add -> LayerNorm.

    hidden_states, input_tensor: (..., H).  w: (H_in, H_out) pre-transposed
    dense weight (kernel computes x @ W).  b, gamma, beta: (H_out,).
    """
    orig_shape = hidden_states.shape
    h_in, h_out = w.shape
    x = hidden_states.reshape(-1, h_in)
    res = input_tensor.reshape(-1, h_out)
    m = x.shape[0]

    dsize = x.dtype.itemsize
    rsize = res.dtype.itemsize
    wsize = w.dtype.itemsize
    osize = hidden_states.dtype.itemsize
    psize = 4  # bias/gamma/beta carried in f32

    vmem_cap = _vmem_capacity_bytes()
    vmem_budget = (vmem_cap * 7) // 8          # headroom below physical VMEM
    weight_bytes = h_in * h_out * wsize

    # --- K tiling: keep the full weight resident whenever it fits VMEM -------
    if tile_k is None:
        resident_fp = _footprint(8, h_in, h_out, dsize, rsize, wsize, osize,
                                 psize, with_acc=False)
        if resident_fp <= vmem_budget or h_in % 128 != 0:
            tile_k = h_in                       # weight DMA'd once, stays resident
        else:
            # Largest multiple of 128 dividing h_in whose (double-buffered)
            # slice stays within ~1/3 of the budget.
            target = vmem_budget // 3
            best = 128
            t = 128
            while t <= h_in:
                if h_in % t == 0 and 2 * t * h_out * wsize <= target:
                    best = t
                t += 128
            tile_k = best
    assert h_in % tile_k == 0
    k_tiled = tile_k != h_in

    # --- M tiling: divisor of M (no big host-side pads) ----------------------
    m_pad = m
    if m > 8 and m % 8 != 0:
        m_pad = _round_up(m, 8)                 # rare, tiny (< 8 rows) fallback
    if tile_m is None:
        tile_m = _pick_tile_m(m_pad, tile_k, h_out, dsize, rsize, wsize, osize,
                              psize, k_tiled, vmem_budget)
    assert m_pad % tile_m == 0
    grid_m = m_pad // tile_m
    grid_k = h_in // tile_k

    if m_pad != m:
        x = jnp.pad(x, ((0, m_pad - m), (0, 0)))
        res = jnp.pad(res, ((0, m_pad - m), (0, 0)))

    # Fuse the three (H,) params into one (3, H) f32 array: one DMA, one spec.
    params = jnp.stack([b, gamma, beta]).astype(jnp.float32)

    footprint = _footprint(tile_m, tile_k, h_out, dsize, rsize, wsize, osize,
                           psize, with_acc=k_tiled)
    vmem_limit = int(min(max(footprint + footprint // 4 + (1 << 20), 16 << 20),
                         vmem_budget))

    weight_reads = grid_m if k_tiled else 1
    cost = pl.CostEstimate(
        flops=2 * m_pad * h_in * h_out + 10 * m_pad * h_out,
        transcendentals=m_pad,
        bytes_accessed=(m_pad * h_in * dsize            # x
                        + m_pad * h_out * rsize         # residual
                        + weight_reads * weight_bytes   # weight (once if resident)
                        + 3 * h_out * psize             # params
                        + m_pad * h_out * osize),       # output
    )

    if k_tiled:
        grid = (grid_m, grid_k)
        in_specs = [
            pl.BlockSpec((tile_m, tile_k), lambda i, k: (i, k)),   # x K slice
            pl.BlockSpec((tile_m, h_out), lambda i, k: (i, 0)),    # residual
            pl.BlockSpec((tile_k, h_out), lambda i, k: (k, 0)),    # weight K slice
            pl.BlockSpec((3, h_out), lambda i, k: (0, 0)),         # params
        ]
        out_specs = pl.BlockSpec((tile_m, h_out), lambda i, k: (i, 0))
        scratch_shapes = [pltpu.VMEM((tile_m, h_out), jnp.float32)]
        kernel = _attn_output_kernel_ktiled
        dims = ("parallel", "arbitrary")
    else:
        grid = (grid_m,)
        in_specs = [
            pl.BlockSpec((tile_m, h_in), lambda i: (i, 0)),        # x rows
            pl.BlockSpec((tile_m, h_out), lambda i: (i, 0)),       # residual
            pl.BlockSpec((h_in, h_out), lambda i: (0, 0)),         # resident weight
            pl.BlockSpec((3, h_out), lambda i: (0, 0)),            # params
        ]
        out_specs = pl.BlockSpec((tile_m, h_out), lambda i: (i, 0))
        scratch_shapes = []
        kernel = _attn_output_kernel_resident
        dims = ("parallel",)

    out = pl.pallas_call(
        kernel,
        out_shape=jax.ShapeDtypeStruct((m_pad, h_out), hidden_states.dtype),
        grid_spec=pltpu.PrefetchScalarGridSpec(
            num_scalar_prefetch=0,
            grid=grid,
            in_specs=in_specs,
            out_specs=out_specs,
            scratch_shapes=scratch_shapes,
        ),
        compiler_params=pltpu.CompilerParams(
            dimension_semantics=dims,
            vmem_limit_bytes=vmem_limit,
        ),
        cost_estimate=cost,
    )(x, res, w, params)

    if m_pad != m:
        out = out[:m]
    return out.reshape(orig_shape[:-1] + (h_out,))


# ----------------------------------------------------------------------------
# Reference + tests
# ----------------------------------------------------------------------------
def _reference(hidden_states, input_tensor, w, b, gamma, beta):
    y = hidden_states @ w + b + input_tensor
    mean = jnp.mean(y, axis=-1, keepdims=True)
    var = jnp.mean((y - mean) ** 2, axis=-1, keepdims=True)
    return (y - mean) * jax.lax.rsqrt(var + LN_EPS) * gamma + beta


def _make_inputs(key, b_, s_, h_):
    k1, k2, k3, k4 = jax.random.split(key, 4)
    hidden_states = jax.random.normal(k1, (b_, s_, h_), dtype=jnp.float32)
    input_tensor = jax.random.normal(k2, (b_, s_, h_), dtype=jnp.float32)
    bound = 1.0 / (h_ ** 0.5)
    # nn.Linear stores weight as (out, in); keep it pre-transposed (in, out).
    w_torch = jax.random.uniform(k3, (h_, h_), jnp.float32, -bound, bound)
    w = w_torch.T
    bias = jax.random.uniform(k4, (h_,), jnp.float32, -bound, bound)
    gamma = jnp.ones((h_,), jnp.float32)   # nn.LayerNorm default weight
    beta = jnp.zeros((h_,), jnp.float32)   # nn.LayerNorm default bias
    return hidden_states, input_tensor, w, bias, gamma, beta


if __name__ == "__main__":
    key = jax.random.PRNGKey(0)
    k_a, k_b = jax.random.split(key)

    # 1) Small shapes (batch=2, seq=8, hidden=32): weight-resident path,
    #    auto tiling gives 2 row tiles (megacore-friendly).
    hs, it, w, b, g, be = _make_inputs(k_a, 2, 8, 32)
    ref = _reference(hs, it, w, b, g, be)
    out = jax.block_until_ready(attention_output(hs, it, w, b, g, be))
    assert out.shape == hs.shape
    assert jnp.allclose(out, ref, atol=1e-4, rtol=1e-4), "mismatch (resident path)"

    # 2) Exercise the K-tiled accumulator path (tile_k < h_in) with hidden=256.
    hs2, it2, w2, b2, g2, be2 = _make_inputs(k_b, 2, 8, 256)
    ref2 = _reference(hs2, it2, w2, b2, g2, be2)
    out2 = jax.block_until_ready(
        attention_output(hs2, it2, w2, b2, g2, be2, tile_m=8, tile_k=128))
    assert jnp.allclose(out2, ref2, atol=1e-4, rtol=1e-4), "mismatch (K-tiled path)"

    print("KERNEL_OK")
</pallas_src>

<mosaic_0001>
module attributes {stable_mosaic.version = 11 : i64} {
  func.func @_attn_output_kernel_resident(%arg0: i32, %arg1: memref<8x32xf32, #tpu.memory_space<vmem>>, %arg2: memref<8x32xf32, #tpu.memory_space<vmem>>, %arg3: memref<32x32xf32, #tpu.memory_space<vmem>>, %arg4: memref<3x32xf32, #tpu.memory_space<vmem>>, %arg5: memref<8x32xf32, #tpu.memory_space<vmem>>) attributes {dimension_semantics = [#tpu.dimension_semantics<parallel>], iteration_bounds = array<i64: 2>, scalar_prefetch = 0 : i64, scratch_operands = 0 : i64, tpu.core_type = #tpu.core_type<tc>, window_params = [{transform_indices = @transform_0, window_bounds = array<i64: 8, 32>}, {transform_indices = @transform_1, window_bounds = array<i64: 8, 32>}, {pipeline_mode = #tpu.pipeline_mode<synchronous>, transform_indices = @transform_2, window_bounds = array<i64: 32, 32>}, {pipeline_mode = #tpu.pipeline_mode<synchronous>, transform_indices = @transform_3, window_bounds = array<i64: 3, 32>}, {transform_indices = @transform_4, window_bounds = array<i64: 8, 32>}]} {
    %c0 = arith.constant 0 : index
    %c0_0 = arith.constant 0 : index
    %0 = vector.load %arg1[%c0, %c0_0] : memref<8x32xf32, #tpu.memory_space<vmem>>, vector<8x32xf32>
    %c0_1 = arith.constant 0 : index
    %c0_2 = arith.constant 0 : index
    %1 = vector.load %arg3[%c0_1, %c0_2] : memref<32x32xf32, #tpu.memory_space<vmem>>, vector<32x32xf32>
    %cst = arith.constant dense<0.000000e+00> : vector<8x32xf32>
    %2 = tpu.matmul %0, %1, %cst {dimension_numbers = #tpu.dot_dimension_numbers<[1], [0], [0], [1], [0, 0, 1, 1], [], []>} : vector<8x32xf32>, vector<32x32xf32>, vector<8x32xf32> -> vector<8x32xf32>
    %c0_3 = arith.constant 0 : index
    %c0_4 = arith.constant 0 : index
    %3 = vector.load %arg4[%c0_3, %c0_4] : memref<3x32xf32, #tpu.memory_space<vmem>>, vector<1x32xf32>
    %4 = vector.broadcast %3 : vector<1x32xf32> to vector<8x32xf32>
    %5 = arith.addf %2, %4 : vector<8x32xf32>
    %c0_5 = arith.constant 0 : index
    %c0_6 = arith.constant 0 : index
    %6 = vector.load %arg2[%c0_5, %c0_6] : memref<8x32xf32, #tpu.memory_space<vmem>>, vector<8x32xf32>
    %7 = arith.addf %5, %6 : vector<8x32xf32>
    %cst_7 = arith.constant dense<0.000000e+00> : vector<8xf32>
    %8 = vector.multi_reduction <add>, %7, %cst_7 [1] : vector<8x32xf32> to vector<8xf32>
    %9 = vector.shape_cast %8 : vector<8xf32> to vector<8x1xf32>
    %cst_8 = arith.constant 3.125000e-02 : f32
    %10 = vector.broadcast %cst_8 : f32 to vector<8x1xf32>
    %11 = arith.mulf %9, %10 : vector<8x1xf32>
    %12 = vector.broadcast %11 : vector<8x1xf32> to vector<8x32xf32>
    %13 = arith.subf %7, %12 : vector<8x32xf32>
    %14 = arith.mulf %13, %13 : vector<8x32xf32>
    %cst_9 = arith.constant dense<0.000000e+00> : vector<8xf32>
    %15 = vector.multi_reduction <add>, %14, %cst_9 [1] : vector<8x32xf32> to vector<8xf32>
    %16 = vector.shape_cast %15 : vector<8xf32> to vector<8x1xf32>
    %cst_10 = arith.constant 3.125000e-02 : f32
    %17 = vector.broadcast %cst_10 : f32 to vector<8x1xf32>
    %18 = arith.mulf %16, %17 : vector<8x1xf32>
    %cst_11 = arith.constant 9.99999974E-6 : f32
    %19 = vector.broadcast %cst_11 : f32 to vector<8x1xf32>
    %20 = arith.addf %18, %19 : vector<8x1xf32>
    %21 = math.rsqrt %20 : vector<8x1xf32>
    %22 = vector.broadcast %21 : vector<8x1xf32> to vector<8x32xf32>
    %23 = arith.mulf %13, %22 : vector<8x32xf32>
    %c1 = arith.constant 1 : index
    %c0_12 = arith.constant 0 : index
    %24 = vector.load %arg4[%c1, %c0_12] : memref<3x32xf32, #tpu.memory_space<vmem>>, vector<1x32xf32>
    %25 = vector.broadcast %24 : vector<1x32xf32> to vector<8x32xf32>
    %26 = arith.mulf %23, %25 : vector<8x32xf32>
    %c2 = arith.constant 2 : index
    %c0_13 = arith.constant 0 : index
    %27 = vector.load %arg4[%c2, %c0_13] : memref<3x32xf32, #tpu.memory_space<vmem>>, vector<1x32xf32>
    %28 = vector.broadcast %27 : vector<1x32xf32> to vector<8x32xf32>
    %29 = arith.addf %26, %28 : vector<8x32xf32>
    %c0_14 = arith.constant 0 : index
    %c0_15 = arith.constant 0 : index
    %30 = vector.load %arg5[%c0_14, %c0_15] : memref<8x32xf32, #tpu.memory_space<vmem>>, vector<8x32xf32>
    tpu.vector_store %arg5[%c0_14, %c0_15], %29 {strides = array<i32>} : memref<8x32xf32, #tpu.memory_space<vmem>>, vector<8x32xf32>,
    return
  }
  func.func @transform_0(%arg0: i32) -> (i32, i32) {
    %c0_i32 = arith.constant 0 : i32
    %c0_i32_0 = arith.constant 0 : i32
    return %arg0, %c0_i32 : i32, i32
  }
  func.func @transform_1(%arg0: i32) -> (i32, i32) {
    %c0_i32 = arith.constant 0 : i32
    %c0_i32_0 = arith.constant 0 : i32
    return %arg0, %c0_i32 : i32, i32
  }
  func.func @transform_2(%arg0: i32) -> (i32, i32) {
    %c0_i32 = arith.constant 0 : i32
    %c0_i32_0 = arith.constant 0 : i32
    %c0_i32_1 = arith.constant 0 : i32
    return %c0_i32, %c0_i32_0 : i32, i32
  }
  func.func @transform_3(%arg0: i32) -> (i32, i32) {
    %c0_i32 = arith.constant 0 : i32
    %c0_i32_0 = arith.constant 0 : i32
    %c0_i32_1 = arith.constant 0 : i32
    return %c0_i32, %c0_i32_0 : i32, i32
  }
  func.func @transform_4(%arg0: i32) -> (i32, i32) {
    %c0_i32 = arith.constant 0 : i32
    %c0_i32_0 = arith.constant 0 : i32
    return %arg0, %c0_i32 : i32, i32
  }
}

</mosaic_0001>

<llo_original>
// kernel: tpu_custom_call.1
$region0: #{tpu_custom_call.1}
  #allocation0 [shape = 'u32[]', space=smem, size = 0x4, offset = 0x4, fixed_abs, tag = 'smem constant byte address 0x4 - core index']
  #allocation1 [shape = 'u32[144,128]{1,0:T(1,128)}', space=vmem, size = 0x12000, scoped, tag = 'internal scratch']
  %s0 = inlined_call_operand.hbm [shape: f32[16,32], index: 0, kind: input, shape index: {}]
  %s1 = inlined_call_operand.hbm [shape: f32[16,32], index: 1, kind: input, shape index: {}]
  %s2 = inlined_call_operand.hbm [shape: f32[32,32], index: 2, kind: input, shape index: {}]
  %s3 = inlined_call_operand.vmem [shape: f32[3,32], index: 3, kind: input, shape index: {}]
  %s4 = inlined_call_operand.hbm [shape: f32[16,32], index: 4, kind: output, shape index: {}]
  %s5 = sld [smem:[#allocation0]]
  $region61: #{tpu_custom_call.1} parent=0
    _
  %s7 = ssub.s32 1, %s5
  %s8 = scalar_select 0, %s7, %s5
  $region1: #{tpu_custom_call.1} parent=0
    #allocation2 [shape = 'u8[8192]{0}', space=vmem, size = 0x2000, scoped, tag = 'input window, operand 0']
    #allocation3 [shape = 's32[2]{0}', space=sflag, size = 0x8, scoped, tag = 'scoped memory for tpu_custom_call.1']
    #allocation4 [shape = 's32[2]{0}', space=sflag, size = 0x8, scoped, tag = 'scoped memory for tpu_custom_call.1']
    #allocation5 [shape = 'u8[8192]{0}', space=vmem, size = 0x2000, scoped, tag = 'input window, operand 1']
    #allocation6 [shape = 's32[2]{0}', space=sflag, size = 0x8, scoped, tag = 'scoped memory for tpu_custom_call.1']
    #allocation7 [shape = 'u8[16384]{0}', space=vmem, size = 0x4000, scoped, tag = 'input window, operand 2, single buffered']
    #allocation8 [shape = 'u8[8192]{0}', space=vmem, size = 0x2000, scoped, tag = 'output window, operand 0']
    %9 = vsyncpa [#allocation3], 0
    %s10 = scalar_lea.sflag [#allocation3], 1
    %11 = vsyncpa %s10, 0
    %12 = vsyncpa [#allocation6], 0
    %s13 = scalar_lea.sflag [#allocation6], 1
    %14 = vsyncpa %s13, 0
    %15 = vsyncpa [#allocation4], 0
    %s16 = scalar_lea.sflag [#allocation4], 1
    %17 = vsyncpa %s16, 0
    loop: start=0, step=1, limit=4
    $region2: #{tpu_custom_call.1} parent=1 // loop_pre_header
      _
    $region3: #{tpu_custom_call.1} parent=1 // loop_header
      %s19 = sphi 0, %s23
      %p20 = scmp.ge.s32.totalorder %s19, 4
      %s29 = sphi 0, %s31
      %s32 = sphi 0, %s29
      %s33 = sphi 0, %s32
      %s49 = sphi 0, %s33
      %s55 = sphi 0, %s57
      %s58 = sphi 0, %s55
      %s59 = sphi 0, %s58
      %s75 = sphi 0, %s59
      %s79 = sphi 0, %s79
      %s81 = sphi 0, %s79
      %s82 = sphi 0, %s81
      %s96 = sphi 0, %s82
      %s100 = sphi 0, %s100
      %s102 = sphi 0, %s100
      %s103 = sphi 0, %s102
      %s117 = sphi 0, %s103
      %s123 = sphi 0, %s125
      %s126 = sphi 0, %s123
      %s127 = sphi 0, %s126
      %s143 = sphi 0, %s127
    $region4: #{tpu_custom_call.1} parent=1 // loop_header_branch
      %22 = sbr.rel (%p20) target = $region8
    $region5: #{tpu_custom_call.1} parent=1 // loop_body
      %s24 = ssub.s32 %s19, 1
      %s25 = ssub.s32 %s19, 2
      %s26 = sadd.s32 %s19, 1
      %s27 = ssub.s32 %s19, %s26
      %p28 = scmp.eq.s32.totalorder %s27, 0
      %s30 = sadd.s32 %s29, 1
      %s31 = scalar_select %p28, %s29, %s30
      %p34 = pneg %p28
      %p35 = scmp.eq.s32.totalorder %s19, 1
      %p36 = por %p34, %p35
      %p37 = scmp.ne.s32.totalorder %s29, %s32
      %p38 = scmp.eq.s32.totalorder %s19, 0
      %p39 = por %p37, %p38
      %p40 = scmp.ne.s32.totalorder %s29, %s32
      %p41 = scmp.eq.s32.totalorder %s24, 1
      %p42 = por %p40, %p41
      %p43 = scmp.ne.s32.totalorder %s32, %s33
      %p44 = scmp.eq.s32.totalorder %s24, 0
      %p45 = por %p43, %p44
      %p46 = scmp.ne.s32.totalorder %s32, %s33
      %p47 = scmp.eq.s32.totalorder %s25, 1
      %p48 = por %p46, %p47
      %p50 = scmp.ne.s32.totalorder %s33, %s49
      %p51 = scmp.eq.s32.totalorder %s25, 0
      %p52 = por %p50, %p51
      %s53 = ssub.s32 %s19, %s26
      %p54 = scmp.eq.s32.totalorder %s53, 0
      %s56 = sadd.s32 %s55, 1
      %s57 = scalar_select %p54, %s55, %s56
      %p60 = pneg %p54
      %p61 = scmp.eq.s32.totalorder %s19, 1
      %p62 = por %p60, %p61
      %p63 = scmp.ne.s32.totalorder %s55, %s58
      %p64 = scmp.eq.s32.totalorder %s19, 0
      %p65 = por %p63, %p64
      %p66 = scmp.ne.s32.totalorder %s55, %s58
      %p67 = scmp.eq.s32.totalorder %s24, 1
      %p68 = por %p66, %p67
      %p69 = scmp.ne.s32.totalorder %s58, %s59
      %p70 = scmp.eq.s32.totalorder %s24, 0
      %p71 = por %p69, %p70
      %p72 = scmp.ne.s32.totalorder %s58, %s59
      %p73 = scmp.eq.s32.totalorder %s25, 1
      %p74 = por %p72, %p73
      %p76 = scmp.ne.s32.totalorder %s59, %s75
      %p77 = scmp.eq.s32.totalorder %s25, 0
      %p78 = por %p76, %p77
      %s80 = sadd.s32 %s79, 1
      %p83 = scmp.eq.s32.totalorder %s19, 1
      %p84 = scmp.ne.s32.totalorder %s79, %s81
      %p85 = scmp.eq.s32.totalorder %s19, 0
      %p86 = por %p84, %p85
      %p87 = scmp.ne.s32.totalorder %s79, %s81
      %p88 = scmp.eq.s32.totalorder %s24, 1
      %p89 = por %p87, %p88
      %p90 = scmp.ne.s32.totalorder %s81, %s82
      %p91 = scmp.eq.s32.totalorder %s24, 0
      %p92 = por %p90, %p91
      %p93 = scmp.ne.s32.totalorder %s81, %s82
      %p94 = scmp.eq.s32.totalorder %s25, 1
      %p95 = por %p93, %p94
      %p97 = scmp.ne.s32.totalorder %s82, %s96
      %p98 = scmp.eq.s32.totalorder %s25, 0
      %p99 = por %p97, %p98
      %s101 = sadd.s32 %s100, 1
      %p104 = scmp.eq.s32.totalorder %s19, 1
      %p105 = scmp.ne.s32.totalorder %s100, %s102
      %p106 = scmp.eq.s32.totalorder %s19, 0
      %p107 = por %p105, %p106
      %p108 = scmp.ne.s32.totalorder %s100, %s102
      %p109 = scmp.eq.s32.totalorder %s24, 1
      %p110 = por %p108, %p109
      %p111 = scmp.ne.s32.totalorder %s102, %s103
      %p112 = scmp.eq.s32.totalorder %s24, 0
      %p113 = por %p111, %p112
      %p114 = scmp.ne.s32.totalorder %s102, %s103
      %p115 = scmp.eq.s32.totalorder %s25, 1
      %p116 = por %p114, %p115
      %p118 = scmp.ne.s32.totalorder %s103, %s117
      %p119 = scmp.eq.s32.totalorder %s25, 0
      %p120 = por %p118, %p119
      %s121 = ssub.s32 %s19, %s26
      %p122 = scmp.eq.s32.totalorder %s121, 0
      %s124 = sadd.s32 %s123, 1
      %s125 = scalar_select %p122, %s123, %s124
      %p128 = pneg %p122
      %p129 = scmp.eq.s32.totalorder %s19, 1
      %p130 = por %p128, %p129
      %p131 = scmp.ne.s32.totalorder %s123, %s126
      %p132 = scmp.eq.s32.totalorder %s19, 0
      %p133 = por %p131, %p132
      %p134 = scmp.ne.s32.totalorder %s123, %s126
      %p135 = scmp.eq.s32.totalorder %s24, 1
      %p136 = por %p134, %p135
      %p137 = scmp.ne.s32.totalorder %s126, %s127
      %p138 = scmp.eq.s32.totalorder %s24, 0
      %p139 = por %p137, %p138
      %p140 = scmp.ne.s32.totalorder %s126, %s127
      %p141 = scmp.eq.s32.totalorder %s25, 1
      %p142 = por %p140, %p141
      %p144 = scmp.ne.s32.totalorder %s127, %s143
      %p145 = scmp.eq.s32.totalorder %s25, 0
      %p146 = por %p144, %p145
      %p147 = scmp.le.s32.totalorder 1, %s19
      %p148 = scmp.lt.s32.totalorder %s19, 3
      %p149 = pnand %p147, %p148
      %p150 = pneg %p149
      // Predicated region
      $region9: #{tpu_custom_call.1} parent=5 // pred_check
        _
      $region10: #{tpu_custom_call.1} parent=5 // pred_check_branch
        %152 = sbr.rel (%p149) target = $region12
      $region11: #{tpu_custom_call.1} parent=5 // pred_region
        %s153 = ssub.s32 %s19, 1
        // Predicated region
        $region13: #{tpu_custom_call.1} parent=11 // pred_check
          %p154 = pneg %p92
        $region14: #{tpu_custom_call.1} parent=11 // pred_check_branch
          %156 = sbr.rel (%p154) target = $region16
        $region15: #{tpu_custom_call.1} parent=11 // pred_region
          %s158 = ssub.s32 512, 512
          %159 = vsyncadd [#allocation6], %s158
          %s160 = sshll.u32 [#allocation7], 4
          %s161 = int_to_ptr.vmem [resolvable:$true] %s160
          %166 = dma.hbm_to_vmem [thread:$0]  %s2, 512, %s161, [#allocation6], 128, 128, 8
        $region16: #{tpu_custom_call.1} parent=11 // pred_fallthru
          _
        // Predicated region
        $region17: #{tpu_custom_call.1} parent=11 // pred_check
          %p167 = pneg %p113
        $region18: #{tpu_custom_call.1} parent=11 // pred_check_branch
          %169 = sbr.rel (%p167) target = $region20
        $region19: #{tpu_custom_call.1} parent=11 // pred_region
          _
        $region20: #{tpu_custom_call.1} parent=11 // pred_fallthru
          _
      $region12: #{tpu_custom_call.1} parent=5 // pred_fallthru
        _
      %p170 = scmp.lt.s32.totalorder %s19, 2
      // Predicated region
      $region21: #{tpu_custom_call.1} parent=5 // pred_check
        %p171 = pneg %p170
      $region22: #{tpu_custom_call.1} parent=5 // pred_check_branch
        %173 = sbr.rel (%p171) target = $region24
      $region23: #{tpu_custom_call.1} parent=5 // pred_region
        // Predicated region
        $region25: #{tpu_custom_call.1} parent=23 // pred_check
          %p174 = pneg %p39
        $region26: #{tpu_custom_call.1} parent=23 // pred_check_branch
          %176 = sbr.rel (%p174) target = $region28
        $region27: #{tpu_custom_call.1} parent=23 // pred_region
          %s177 = sand.u32 %s29, 1
          %s178 = scalar_lea.sflag [#allocation3], %s177
          %s179 = sand.u32 %s29, 1
          %s180 = smul.addr %s179, 8
          %s181 = scalar_lea.vmem [#allocation2], %s180
          %s183 = ssub.s32 128, 128
          %184 = vsyncadd %s178, %s183
          %s185 = smul.addr %s19, 128
          %s186 = scalar_lea.hbm %s0, %s185
          %s188 = sshll.u32 %s181, 4
          %s189 = int_to_ptr.vmem [resolvable:$true] %s188
          %191 = dma.hbm_to_vmem [thread:$0]  %s186, 128, %s189, %s178
        $region28: #{tpu_custom_call.1} parent=23 // pred_fallthru
          _
        // Predicated region
        $region29: #{tpu_custom_call.1} parent=23 // pred_check
          %p192 = pneg %p65
        $region30: #{tpu_custom_call.1} parent=23 // pred_check_branch
          %194 = sbr.rel (%p192) target = $region32
        $region31: #{tpu_custom_call.1} parent=23 // pred_region
          %s195 = sand.u32 %s19, 1
          %s196 = scalar_lea.sflag [#allocation6], %s195
          %s197 = sand.u32 %s55, 1
          %s198 = smul.addr %s197, 8
          %s199 = scalar_lea.vmem [#allocation5], %s198
          %s201 = ssub.s32 128, 128
          %202 = vsyncadd %s196, %s201
          %s203 = smul.addr %s19, 128
          %s204 = scalar_lea.hbm %s1, %s203
          %s206 = sshll.u32 %s199, 4
          %s207 = int_to_ptr.vmem [resolvable:$true] %s206
          %209 = dma.hbm_to_vmem [thread:$0]  %s204, 128, %s207, %s196
        $region32: #{tpu_custom_call.1} parent=23 // pred_fallthru
          _
      $region24: #{tpu_custom_call.1} parent=5 // pred_fallthru
        _
      %p210 = scmp.le.s32.totalorder 1, %s19
      %p211 = scmp.lt.s32.totalorder %s19, 3
      %p212 = pnand %p210, %p211
      %p213 = pneg %p212
      // Predicated region
      $region33: #{tpu_custom_call.1} parent=5 // pred_check
        _
      $region34: #{tpu_custom_call.1} parent=5 // pred_check_branch
        %215 = sbr.rel (%p212) target = $region36
      $region35: #{tpu_custom_call.1} parent=5 // pred_region
        %s216 = ssub.s32 %s19, 1
        %s217 = sand.u32 %s32, 1
        %s218 = scalar_lea.sflag [#allocation3], %s217
        %s219 = sand.u32 %s32, 1
        %s220 = smul.addr %s219, 8
        %s221 = scalar_lea.vmem [#allocation2], %s220
        // Predicated region
        $region37: #{tpu_custom_call.1} parent=35 // pred_check
          %p222 = pneg %p45
        $region38: #{tpu_custom_call.1} parent=35 // pred_check_branch
          %224 = sbr.rel (%p222) target = $region40
        $region39: #{tpu_custom_call.1} parent=35 // pred_region
          %225 = dma.done %s218, 128
        $region40: #{tpu_custom_call.1} parent=35 // pred_fallthru
          _
        %s226 = sand.u32 %s24, 1
        %s227 = scalar_lea.sflag [#allocation6], %s226
        %s228 = sand.u32 %s58, 1
        %s229 = smul.addr %s228, 8
        %s230 = scalar_lea.vmem [#allocation5], %s229
        // Predicated region
        $region41: #{tpu_custom_call.1} parent=35 // pred_check
          %p231 = pneg %p71
        $region42: #{tpu_custom_call.1} parent=35 // pred_check_branch
          %233 = sbr.rel (%p231) target = $region44
        $region43: #{tpu_custom_call.1} parent=35 // pred_region
          %234 = dma.done %s227, 128
        $region44: #{tpu_custom_call.1} parent=35 // pred_fallthru
          _
        // Predicated region
        $region45: #{tpu_custom_call.1} parent=35 // pred_check
          %p235 = pneg %p92
        $region46: #{tpu_custom_call.1} parent=35 // pred_check_branch
          %237 = sbr.rel (%p235) target = $region48
        $region47: #{tpu_custom_call.1} parent=35 // pred_region
          %238 = dma.done [#allocation6], 512
        $region48: #{tpu_custom_call.1} parent=35 // pred_fallthru
          _
        %s239 = sand.u32 %s32, 1
        %s240 = scalar_lea.sflag [#allocation3], %s239
        %s241 = sand.u32 %s32, 1
        %s242 = smul.addr %s241, 8
        %s243 = scalar_lea.vmem [#allocation2], %s242
        %p244 = pneg %p45
        %p245 = pneg %p42
        %s246 = sand.u32 %s24, 1
        %s247 = scalar_lea.sflag [#allocation6], %s246
        %s248 = sand.u32 %s58, 1
        %s249 = smul.addr %s248, 8
        %s250 = scalar_lea.vmem [#allocation5], %s249
        %p251 = pneg %p71
        %p252 = pneg %p68
        %p253 = pneg %p92
        %p254 = pneg %p89
        %p255 = pneg %p113
        %p256 = pneg %p110
        %p257 = pneg %p139
        %p258 = pneg %p136
        %s259 = sand.u32 %s126, 1
        %s260 = scalar_lea.sflag [#allocation4], %s259
        %s261 = sand.u32 %s126, 1
        %s262 = smul.addr %s261, 8
        %s263 = scalar_lea.vmem [#allocation8], %s262
        %v264 = vld [vmem:[%s221] sm:$0xff]
        %v265 = vld [vmem:[#allocation7] sm:$0xff]
        %v266 = vld [vmem:[#allocation7 + $0x8] sm:$0xff]
        %v267 = vld [vmem:[#allocation7 + $0x10] sm:$0xff]
        %v268 = vld [vmem:[#allocation7 + $0x18] sm:$0xff]
        %v269 = vld [vmem:[%s3] sm:$0x1]
        %v270 = vlaneseq
        %v271 = vshrl.u32 %v270, 7
        %v272 = vsub.s32 0, %v271
        %v273 = vrot.slane %v269, %v272
        %vm274 = vcmask 261120
        %v276 = vsel %vm274, %v264, 0
        %278 = vmatprep.subr.mxu0 0.0
        %279 = vmatpush1.msra.mxu0 0.0
        %280 = vmatprep.subr.mxu0 0.0
        %281 = vmatpush1.msra.mxu0 0.0
        %282 = vmatprep.subr.mxu0 0.0
        %283 = vmatpush1.msra.mxu0 0.0
        %284 = vmatprep.subr.mxu0 0.0
        %285 = vmatpush1.msra.mxu0 0.0
        %286 = vmatprep.subr.mxu0 0.0
        %287 = vmatpush1.msra.mxu0 0.0
        %288 = vmatprep.subr.mxu0 0.0
        %289 = vmatpush1.msra.mxu0 0.0
        %290 = vmatprep.subr.mxu0 0.0
        %291 = vmatpush1.msra.mxu0 0.0
        %292 = vmatprep.subr.mxu0 0.0
        %293 = vmatpush1.msra.mxu0 0.0
        %294 = vmatprep.subr.mxu0 0.0
        %295 = vmatpush1.msra.mxu0 0.0
        %296 = vmatprep.subr.mxu0 0.0
        %297 = vmatpush1.msra.mxu0 0.0
        %298 = vmatprep.subr.mxu0 0.0
        %299 = vmatpush1.msra.mxu0 0.0
        %300 = vmatprep.subr.mxu0 0.0
        %301 = vmatpush1.msra.mxu0 0.0
        %302 = vmatprep.subr.mxu0 0.0
        %303 = vmatpush1.msra.mxu0 %v268
        %304 = vmatprep.subr.mxu0 0.0
        %305 = vmatpush1.msra.mxu0 %v267
        %306 = vmatprep.subr.mxu0 0.0
        %307 = vmatpush1.msra.mxu0 %v266
        %308 = vmatprep.subr.mxu0 0.0
        %309 = vmatpush1.msra.mxu0 %v265
        %310 = vmatprep.subr.mxu0 0.0
        %311 = vmatpush2.msra.mxu0 0.0
        %312 = vmatprep.subr.mxu0 0.0
        %313 = vmatpush2.msra.mxu0 0.0
        %314 = vmatprep.subr.mxu0 0.0
        %315 = vmatpush2.msra.mxu0 0.0
        %316 = vmatprep.subr.mxu0 0.0
        %317 = vmatpush2.msra.mxu0 0.0
        %318 = vmatprep.subr.mxu0 0.0
        %319 = vmatpush2.msra.mxu0 0.0
        %320 = vmatprep.subr.mxu0 0.0
        %321 = vmatpush2.msra.mxu0 0.0
        %322 = vmatprep.subr.mxu0 0.0
        %323 = vmatpush2.msra.mxu0 0.0
        %324 = vmatprep.subr.mxu0 0.0
        %325 = vmatpush2.msra.mxu0 0.0
        %326 = vmatprep.subr.mxu0 0.0
        %327 = vmatpush2.msra.mxu0 0.0
        %328 = vmatprep.subr.mxu0 0.0
        %329 = vmatpush2.msra.mxu0 0.0
        %330 = vmatprep.subr.mxu0 0.0
        %331 = vmatpush2.msra.mxu0 0.0
        %332 = vmatprep.subr.mxu0 0.0
        %333 = vmatpush2.msra.mxu0 0.0
        %334 = vmatprep.subr.mxu0 0.0
        %335 = vmatpush2.msra.mxu0 0.0
        %336 = vmatprep.subr.mxu0 0.0
        %337 = vmatpush2.msra.mxu0 0.0
        %338 = vmatprep.subr.mxu0 0.0
        %339 = vmatpush2.msra.mxu0 0.0
        %340 = vmatprep.subr.mxu0 0.0
        %341 = vmatpush2.msra.mxu0 0.0
        %342 = vmatprep.mubr.f32.mxu0 0.0
        %343 = vmatmul.mubr.f32.gmra.mxu0 %v276
        %v344 = vpop.f32.mrf.mxu0
        %v345 = vadd.f32 %v273, %v344
        %v346 = vpop.f32.mrf.mxu0
        %347 = vdwg.mxu0
        %v348 = vld [vmem:[%s230] sm:$0xff]
        %v349 = vadd.f32 %v345, %v348
        %v350 = vsel %vm274, %v349, 0.0
        %351 = vadd.xlane.f32.xlu0 %v350
        %v352 = vpop.xlane.xlu0 %351
        %v353 = vmul.f32 %v352, 0.03125
        %v354 = vsub.f32 %v349, %v353
        %v355 = vmul.f32 %v354, %v354
        %v356 = vsel %vm274, %v355, 0.0
        %357 = vadd.xlane.f32.xlu0 %v356
        %v358 = vpop.xlane.xlu0 %357
        %v359 = vmul.f32 %v358, 0.03125
        %v360 = vadd.f32 %v359, 1e-05
        %v361 = vrsqrt.pop %v360
        %v362 = vmul.f32 %v354, %v361
        %v363 = vld [vmem:[%s3 + $0x1] sm:$0x1]
        %v364 = vlaneseq
        %v365 = vshrl.u32 %v364, 7
        %v366 = vsub.s32 0, %v365
        %v367 = vrot.slane %v363, %v366
        %v368 = vmul.f32 %v362, %v367
        %v369 = vld [vmem:[%s3 + $0x2] sm:$0x1]
        %v370 = vlaneseq
        %v371 = vshrl.u32 %v370, 7
        %v372 = vsub.s32 0, %v371
        %v373 = vrot.slane %v369, %v372
        %v374 = vadd.f32 %v368, %v373
        %375 = vst.msk [vmem:[%s263] sm:$0xff] %vm274, %v374
        %s376 = sand.u32 %s126, 1
        %s377 = scalar_lea.sflag [#allocation4], %s376
        %s378 = sand.u32 %s126, 1
        %s379 = smul.addr %s378, 8
        %s380 = scalar_lea.vmem [#allocation8], %s379
        // Predicated region
        $region49: #{tpu_custom_call.1} parent=35 // pred_check
          %p381 = pneg %p136
        $region50: #{tpu_custom_call.1} parent=35 // pred_check_branch
          %383 = sbr.rel (%p381) target = $region52
        $region51: #{tpu_custom_call.1} parent=35 // pred_region
          %s385 = ssub.s32 128, 128
          %386 = vsyncadd %s377, %s385
          %s387 = smul.addr %s24, 128
          %s388 = scalar_lea.hbm %s4, %s387
          %s390 = sshll.u32 %s380, 4
          %s391 = int_to_ptr.vmem [resolvable:$true] %s390
          %393 = dma.vmem_to_hbm [thread:$0]  %s391, 128, %s388, %s377
        $region52: #{tpu_custom_call.1} parent=35 // pred_fallthru
          _
      $region36: #{tpu_custom_call.1} parent=5 // pred_fallthru
        _
      %p394 = scmp.le.s32.totalorder 2, %s19
      // Predicated region
      $region53: #{tpu_custom_call.1} parent=5 // pred_check
        %p395 = pneg %p394
      $region54: #{tpu_custom_call.1} parent=5 // pred_check_branch
        %397 = sbr.rel (%p395) target = $region56
      $region55: #{tpu_custom_call.1} parent=5 // pred_region
        %s398 = ssub.s32 %s19, 2
        // Predicated region
        $region57: #{tpu_custom_call.1} parent=55 // pred_check
          %p399 = pneg %p142
        $region58: #{tpu_custom_call.1} parent=55 // pred_check_branch
          %401 = sbr.rel (%p399) target = $region60
        $region59: #{tpu_custom_call.1} parent=55 // pred_region
          %s402 = sand.u32 %s127, 1
          %s403 = scalar_lea.sflag [#allocation4], %s402
          %s404 = sand.u32 %s127, 1
          %s405 = smul.addr %s404, 8
          %s406 = scalar_lea.vmem [#allocation8], %s405
          %407 = dma.done %s403, 128
        $region60: #{tpu_custom_call.1} parent=55 // pred_fallthru
          _
      $region56: #{tpu_custom_call.1} parent=5 // pred_fallthru
        _
    $region6: #{tpu_custom_call.1} parent=1 // loop_footer
      %s23 = sadd.s32 1, %s19
    $region7: #{tpu_custom_call.1} parent=1 // loop_footer_branch
      %18 = sbr.rel target = $region3
    $region8: #{tpu_custom_call.1} parent=1 // loop_exit
      _
    %408 = vsyncpa [#allocation3], 1
    %s409 = scalar_lea.sflag [#allocation3], 1
    %410 = vsyncpa %s409, 1
    %411 = vsyncpa [#allocation6], 1
    %s412 = scalar_lea.sflag [#allocation6], 1
    %413 = vsyncpa %s412, 1
    %414 = vsyncpa [#allocation4], 1
    %s415 = scalar_lea.sflag [#allocation4], 1
    %416 = vsyncpa %s415, 1

</llo_original>
